<compile_context>
chip_gen: v7x
topology: tpu7x:2x2x1
jax: 0.10.0
libtpu: 0.0.40
codegen_flags: <defaults>
</compile_context>

<pallas_src>
import functools

import jax
import jax.numpy as jnp
from jax.experimental import pallas as pl
from jax.experimental.pallas import tpu as pltpu

_LANE = 128


def _round_up(x, m):
    return ((x + m - 1) // m) * m


def _net_kernel(x_ref, w1_ref, b1_ref, w2_ref, b2_ref, o_ref):
    # Hidden layer on the MXU, bias + ReLU on the VPU, output layer on the
    # MXU, lane-dense (Op % 128 == 0) store.
    h = jnp.dot(x_ref[...], w1_ref[...],
                preferred_element_type=jnp.float32)           # [TB, H]
    h = jnp.maximum(h + b1_ref[...], 0.0)                     # bias + ReLU
    q = jnp.dot(h, w2_ref[...],
                preferred_element_type=jnp.float32)           # [TB, Op]
    o_ref[...] = (q + b2_ref[...]).astype(o_ref.dtype)        # full-lane vst


def pad_out_params(w2, b2, lane=_LANE):
    """Pad ONLY the output dimension (once, at init time) so the kernel's
    output tile is lane-dense. w1/b1 and the contraction dims stay unpadded."""
    H, O = w2.shape
    Op = _round_up(O, lane)
    w2p = jnp.zeros((H, Op), w2.dtype).at[:, :O].set(w2)
    b2p = jnp.zeros((1, Op), b2.dtype).at[:, :O].set(b2)
    return w2p, b2p


@functools.partial(jax.jit, static_argnames=("n_output", "block_b"))
def net_forward(x, w1, b1, w2p, b2p, *, n_output, block_b=4096):
    """Forward pass of Net as a single Pallas kernel.

    x:   [B, n_feature] float32 (unpadded)
    w1:  [n_feature, n_hidden], b1: [1, n_hidden]       (unpadded)
    w2p: [n_hidden, Op], b2p: [1, Op]                   (output-lane padded)
    returns [B, n_output] float32
    """
    if block_b % 8 != 0:
        raise ValueError("block_b must be a multiple of 8 (sublane alignment)")

    B, F = x.shape
    H = w1.shape[1]
    Op = w2p.shape[1]

    if B <= block_b:
        # Single invocation: whole (unpadded) batch in VMEM, no grid, no
        # pipeline prologue/epilogue, no wrapper-side zero materialization.
        out = pl.pallas_call(
            _net_kernel,
            out_shape=jax.ShapeDtypeStruct((B, Op), jnp.float32),
            in_specs=[pl.BlockSpec(memory_space=pltpu.MemorySpace.VMEM)] * 5,
            out_specs=pl.BlockSpec(memory_space=pltpu.MemorySpace.VMEM),
        )(x, w1, b1, w2p, b2p)
        # Tiny slice; fuses with the consumer under jit.
        return out[:, :n_output]

    # ---- multi-tile fallback for very large batches ----
    nb = -(-B // block_b)                 # cdiv
    if nb % 2:                            # even tile count -> balanced across
        nb += 1                           # the two v7x TensorCores
    TB = _round_up(-(-B // nb), 8)        # balanced tile, 8-sublane aligned
    Bp = nb * TB
    # Only batch ROWS are zero-padded (features/weights stay unpadded).
    xp = jnp.zeros((Bp, F), x.dtype).at[:B].set(x)

    out = pl.pallas_call(
        _net_kernel,
        out_shape=jax.ShapeDtypeStruct((Bp, Op), jnp.float32),
        grid=(nb,),
        in_specs=[
            pl.BlockSpec((TB, F), lambda i: (i, 0)),   # batch-tiled input
            pl.BlockSpec((F, H), lambda i: (0, 0)),    # weights: constant block
            pl.BlockSpec((1, H), lambda i: (0, 0)),    #   -> fetched once,
            pl.BlockSpec((H, Op), lambda i: (0, 0)),   #   resident across tiles
            pl.BlockSpec((1, Op), lambda i: (0, 0)),
        ],
        out_specs=pl.BlockSpec((TB, Op), lambda i: (i, 0)),   # lane-dense
        compiler_params=pltpu.CompilerParams(
            dimension_semantics=("parallel",)),
    )(xp, w1, b1, w2p, b2p)

    return out[:B, :n_output]


def init_params(key, n_feature, n_hidden, n_output):
    """Deterministic init mimicking PyTorch nn.Linear default
    U(-1/sqrt(fan_in), +1/sqrt(fan_in)). Weights stored transposed relative
    to PyTorch: [in, out]."""
    k1, k2, k3, k4 = jax.random.split(key, 4)
    bound1 = 1.0 / jnp.sqrt(n_feature)
    bound2 = 1.0 / jnp.sqrt(n_hidden)
    w1 = jax.random.uniform(k1, (n_feature, n_hidden), jnp.float32, -bound1, bound1)
    b1 = jax.random.uniform(k2, (1, n_hidden), jnp.float32, -bound1, bound1)
    w2 = jax.random.uniform(k3, (n_hidden, n_output), jnp.float32, -bound2, bound2)
    b2 = jax.random.uniform(k4, (1, n_output), jnp.float32, -bound2, bound2)
    return w1, b1, w2, b2


if __name__ == "__main__":
    key = jax.random.PRNGKey(0)
    kp, kx1, kx2 = jax.random.split(key, 3)

    # Shapes consistent with a DQN maze agent:
    # n_feature=4 (state), n_hidden=32, n_output=4 actions.
    n_feature, n_hidden, n_output = 4, 32, 4

    # Raw (PyTorch-equivalent) params; only the output side is padded, once.
    w1, b1, w2, b2 = init_params(kp, n_feature, n_hidden, n_output)
    w2p, b2p = pad_out_params(w2, b2)

    def ref_fwd(x):
        return jnp.maximum(x @ w1 + b1, 0.0) @ w2 + b2

    # 1) Tiny action-selection-sized batch: single invocation, zero padding.
    x_small = jax.random.normal(kx1, (2, n_feature), jnp.float32)
    out_small = jax.block_until_ready(
        net_forward(x_small, w1, b1, w2p, b2p, n_output=n_output))
    assert out_small.shape == (2, n_output)
    assert jnp.allclose(out_small, ref_fwd(x_small), atol=1e-5, rtol=1e-5)

    # 2) Replay-buffer batch on the default single-tile path (B=300 <= 4096).
    x_mid = jax.random.normal(kx2, (300, n_feature), jnp.float32)
    out_mid = jax.block_until_ready(
        net_forward(x_mid, w1, b1, w2p, b2p, n_output=n_output))
    assert out_mid.shape == (300, n_output)
    assert jnp.allclose(out_mid, ref_fwd(x_mid), atol=1e-5, rtol=1e-5)

    # 3) Force the multi-tile path (block_b=128 -> 4 balanced tiles of 80 rows,
    #    even count for v7x megacore balance) and check it matches too.
    out_mt = jax.block_until_ready(
        net_forward(x_mid, w1, b1, w2p, b2p, n_output=n_output, block_b=128))
    assert out_mt.shape == (300, n_output)
    assert jnp.allclose(out_mt, ref_fwd(x_mid), atol=1e-5, rtol=1e-5)

    print("KERNEL_OK")
</pallas_src>

<mosaic_0001>
module attributes {stable_mosaic.version = 11 : i64} {
  func.func @_net_kernel(%arg0: memref<2x4xf32, #tpu.memory_space<vmem>>, %arg1: memref<4x32xf32, #tpu.memory_space<vmem>>, %arg2: memref<1x32xf32, #tpu.memory_space<vmem>>, %arg3: memref<32x128xf32, #tpu.memory_space<vmem>>, %arg4: memref<1x128xf32, #tpu.memory_space<vmem>>, %arg5: memref<2x128xf32, #tpu.memory_space<vmem>>) attributes {dimension_semantics = [], scalar_prefetch = 0 : i64, scratch_operands = 0 : i64, tpu.core_type = #tpu.core_type<tc>} {
    %c0 = arith.constant 0 : index
    %c0_0 = arith.constant 0 : index
    %0 = vector.load %arg0[%c0, %c0_0] : memref<2x4xf32, #tpu.memory_space<vmem>>, vector<2x4xf32>
    %c0_1 = arith.constant 0 : index
    %c0_2 = arith.constant 0 : index
    %1 = vector.load %arg1[%c0_1, %c0_2] : memref<4x32xf32, #tpu.memory_space<vmem>>, vector<4x32xf32>
    %cst = arith.constant dense<0.000000e+00> : vector<2x32xf32>
    %2 = tpu.matmul %0, %1, %cst {dimension_numbers = #tpu.dot_dimension_numbers<[1], [0], [0], [1], [0, 0, 1, 1], [], []>} : vector<2x4xf32>, vector<4x32xf32>, vector<2x32xf32> -> vector<2x32xf32>
    %c0_3 = arith.constant 0 : index
    %c0_4 = arith.constant 0 : index
    %3 = vector.load %arg2[%c0_3, %c0_4] : memref<1x32xf32, #tpu.memory_space<vmem>>, vector<1x32xf32>
    %4 = vector.broadcast %3 : vector<1x32xf32> to vector<2x32xf32>
    %5 = arith.addf %2, %4 : vector<2x32xf32>
    %cst_5 = arith.constant 0.000000e+00 : f32
    %6 = vector.broadcast %cst_5 : f32 to vector<2x32xf32>
    %7 = arith.maximumf %5, %6 : vector<2x32xf32>
    %c0_6 = arith.constant 0 : index
    %c0_7 = arith.constant 0 : index
    %8 = vector.load %arg3[%c0_6, %c0_7] : memref<32x128xf32, #tpu.memory_space<vmem>>, vector<32x128xf32>
    %cst_8 = arith.constant dense<0.000000e+00> : vector<2x128xf32>
    %9 = tpu.matmul %7, %8, %cst_8 {dimension_numbers = #tpu.dot_dimension_numbers<[1], [0], [0], [1], [0, 0, 1, 1], [], []>} : vector<2x32xf32>, vector<32x128xf32>, vector<2x128xf32> -> vector<2x128xf32>
    %c0_9 = arith.constant 0 : index
    %c0_10 = arith.constant 0 : index
    %10 = vector.load %arg4[%c0_9, %c0_10] : memref<1x128xf32, #tpu.memory_space<vmem>>, vector<1x128xf32>
    %11 = vector.broadcast %10 : vector<1x128xf32> to vector<2x128xf32>
    %12 = arith.addf %9, %11 : vector<2x128xf32>
    %c0_11 = arith.constant 0 : index
    %c0_12 = arith.constant 0 : index
    %13 = vector.load %arg5[%c0_11, %c0_12] : memref<2x128xf32, #tpu.memory_space<vmem>>, vector<2x128xf32>
    tpu.vector_store %arg5[%c0_11, %c0_12], %12 {strides = array<i32>} : memref<2x128xf32, #tpu.memory_space<vmem>>, vector<2x128xf32>,
    return
  }
}

</mosaic_0001>

<llo_original>
// kernel: net_forward.1
$region0: #{net_forward.1}
  #allocation0 [shape = 'u32[]', space=smem, size = 0x4, offset = 0x4, fixed_abs, tag = 'smem constant byte address 0x4 - core index']
  #allocation1 [shape = 'u32[144,128]{1,0:T(1,128)}', space=vmem, size = 0x12000, scoped, tag = 'internal scratch']
  %s0 = inlined_call_operand.hbm [shape: f32[2,4], index: 0, kind: input, shape index: {}]
  %s1 = inlined_call_operand.hbm [shape: f32[4,32], index: 1, kind: input, shape index: {}]
  %s2 = inlined_call_operand.vmem [shape: f32[1,32], index: 2, kind: input, shape index: {}]
  %s3 = inlined_call_operand.hbm [shape: f32[32,128], index: 3, kind: input, shape index: {}]
  %s4 = inlined_call_operand.vmem [shape: f32[1,128], index: 4, kind: input, shape index: {}]
  %s5 = inlined_call_operand.hbm [shape: f32[2,128], index: 5, kind: output, shape index: {}]
  %s6 = sld [smem:[#allocation0]]
  $region42: #{net_forward.1} parent=0
    _
  %s8 = ssub.s32 1, %s6
  %s9 = scalar_select 0, %s8, %s6
  $region1: #{net_forward.1} parent=0
    #allocation2 [shape = 'u8[1024]{0}', space=vmem, size = 0x400, scoped, tag = 'input window, operand 0, single buffered']
    #allocation3 [shape = 's32[1]{0}', space=sflag, size = 0x4, scoped, tag = 'scoped memory for net_forward.1']
    #allocation4 [shape = 's32[1]{0}', space=sflag, size = 0x4, scoped, tag = 'scoped memory for net_forward.1']
    #allocation5 [shape = 'u8[2048]{0}', space=vmem, size = 0x800, scoped, tag = 'input window, operand 1, single buffered']
    #allocation6 [shape = 's32[1]{0}', space=sflag, size = 0x4, scoped, tag = 'scoped memory for net_forward.1']
    #allocation7 [shape = 'u8[16384]{0}', space=vmem, size = 0x4000, scoped, tag = 'input window, operand 3, single buffered']
    #allocation8 [shape = 'u8[1024]{0}', space=vmem, size = 0x400, scoped, tag = 'output window, operand 0, single buffered']
    %10 = vsyncpa [#allocation3], 0
    %11 = vsyncpa [#allocation6], 0
    %12 = vsyncpa [#allocation4], 0
    // Predicated region
    $region2: #{net_forward.1} parent=1 // pred_check
      _
    $region3: #{net_forward.1} parent=1 // pred_check_branch
      %14 = sbr.rel (0) target = $region5
    $region4: #{net_forward.1} parent=1 // pred_region
      %s16 = ssub.s32 32, 32
      %17 = vsyncadd [#allocation3], %s16
      %s19 = sshll.u32 [#allocation2], 4
      %s20 = int_to_ptr.vmem [resolvable:$true] %s19
      %22 = dma.hbm_to_vmem [thread:$0]  %s0, 32, %s20, [#allocation3]
    $region5: #{net_forward.1} parent=1 // pred_fallthru
      _
    // Predicated region
    $region6: #{net_forward.1} parent=1 // pred_check
      _
    $region7: #{net_forward.1} parent=1 // pred_check_branch
      %24 = sbr.rel (0) target = $region9
    $region8: #{net_forward.1} parent=1 // pred_region
      %s26 = ssub.s32 64, 64
      %27 = vsyncadd [#allocation6], %s26
      %s29 = sshll.u32 [#allocation5], 4
      %s30 = int_to_ptr.vmem [resolvable:$true] %s29
      %32 = dma.hbm_to_vmem [thread:$0]  %s1, 64, %s30, [#allocation6]
    $region9: #{net_forward.1} parent=1 // pred_fallthru
      _
    // Predicated region
    $region10: #{net_forward.1} parent=1 // pred_check
      _
    $region11: #{net_forward.1} parent=1 // pred_check_branch
      %34 = sbr.rel (0) target = $region13
    $region12: #{net_forward.1} parent=1 // pred_region
      _
    $region13: #{net_forward.1} parent=1 // pred_fallthru
      _
    // Predicated region
    $region14: #{net_forward.1} parent=1 // pred_check
      _
    $region15: #{net_forward.1} parent=1 // pred_check_branch
      %36 = sbr.rel (0) target = $region17
    $region16: #{net_forward.1} parent=1 // pred_region
      %s38 = ssub.s32 512, 512
      %39 = vsyncadd [#allocation6], %s38
      %s40 = sshll.u32 [#allocation7], 4
      %s41 = int_to_ptr.vmem [resolvable:$true] %s40
      %46 = dma.hbm_to_vmem [thread:$0]  %s3, 512, %s41, [#allocation6], 128, 128, 8
    $region17: #{net_forward.1} parent=1 // pred_fallthru
      _
    // Predicated region
    $region18: #{net_forward.1} parent=1 // pred_check
      _
    $region19: #{net_forward.1} parent=1 // pred_check_branch
      %48 = sbr.rel (0) target = $region21
    $region20: #{net_forward.1} parent=1 // pred_region
      _
    $region21: #{net_forward.1} parent=1 // pred_fallthru
      _
    // Predicated region
    $region22: #{net_forward.1} parent=1 // pred_check
      _
    $region23: #{net_forward.1} parent=1 // pred_check_branch
      %50 = sbr.rel (0) target = $region25
    $region24: #{net_forward.1} parent=1 // pred_region
      %51 = dma.done [#allocation3], 32
    $region25: #{net_forward.1} parent=1 // pred_fallthru
      _
    // Predicated region
    $region26: #{net_forward.1} parent=1 // pred_check
      _
    $region27: #{net_forward.1} parent=1 // pred_check_branch
      %53 = sbr.rel (0) target = $region29
    $region28: #{net_forward.1} parent=1 // pred_region
      %54 = dma.done [#allocation6], 64
    $region29: #{net_forward.1} parent=1 // pred_fallthru
      _
    // Predicated region
    $region30: #{net_forward.1} parent=1 // pred_check
      _
    $region31: #{net_forward.1} parent=1 // pred_check_branch
      %56 = sbr.rel (0) target = $region33
    $region32: #{net_forward.1} parent=1 // pred_region
      %57 = dma.done [#allocation6], 512
    $region33: #{net_forward.1} parent=1 // pred_fallthru
      _
    %v58 = vld [vmem:[#allocation2] sm:$0x3]
    %v59 = vld [vmem:[#allocation5] sm:$0xf]
    %v60 = vld [vmem:[%s2] sm:$0x1]
    %v62 = vlaneseq
    %v63 = vshrl.u32 %v62, 7
    %v64 = vsub.s32 0, %v63
    %v65 = vrot.slane %v60, %v64
    %vm67 = vcmask 31744
    %v69 = vsel %vm67, %v58, 0
    %vm71 = vcmask 1043456
    %v73 = vsel %vm71, %v59, 0
    %75 = vmatprep.subr.mxu0 0.0
    %76 = vmatpush1.msra.mxu0 %v73
    %77 = vmatprep.subr.mxu0 0.0
    %78 = vmatpush1.msra.mxu0 0.0
    %79 = vmatprep.subr.mxu0 0.0
    %80 = vmatpush1.msra.mxu0 0.0
    %81 = vmatprep.subr.mxu0 0.0
    %82 = vmatpush1.msra.mxu0 0.0
    %83 = vmatprep.subr.mxu0 0.0
    %84 = vmatpush1.msra.mxu0 0.0
    %85 = vmatprep.subr.mxu0 0.0
    %86 = vmatpush1.msra.mxu0 0.0
    %87 = vmatprep.subr.mxu0 0.0
    %88 = vmatpush1.msra.mxu0 0.0
    %89 = vmatprep.subr.mxu0 0.0
    %90 = vmatpush1.msra.mxu0 0.0
    %91 = vmatprep.subr.mxu0 0.0
    %92 = vmatpush1.msra.mxu0 0.0
    %93 = vmatprep.subr.mxu0 0.0
    %94 = vmatpush1.msra.mxu0 0.0
    %95 = vmatprep.subr.mxu0 0.0
    %96 = vmatpush1.msra.mxu0 0.0
    %97 = vmatprep.subr.mxu0 0.0
    %98 = vmatpush1.msra.mxu0 0.0
    %99 = vmatprep.subr.mxu0 0.0
    %100 = vmatpush1.msra.mxu0 0.0
    %101 = vmatprep.subr.mxu0 0.0
    %102 = vmatpush1.msra.mxu0 0.0
    %103 = vmatprep.subr.mxu0 0.0
    %104 = vmatpush1.msra.mxu0 0.0
    %105 = vmatprep.subr.mxu0 0.0
    %106 = vmatpush1.msra.mxu0 0.0
    %107 = vmatprep.subr.mxu0 0.0
    %108 = vmatpush1.msra.mxu0 0.0
    %109 = vmatprep.subr.mxu0 0.0
    %110 = vmatpush1.msra.mxu0 0.0
    %111 = vmatprep.subr.mxu0 0.0
    %112 = vmatpush1.msra.mxu0 0.0
    %113 = vmatprep.subr.mxu0 0.0
    %114 = vmatpush1.msra.mxu0 0.0
    %115 = vmatprep.subr.mxu0 0.0
    %116 = vmatpush1.msra.mxu0 0.0
    %117 = vmatprep.subr.mxu0 0.0
    %118 = vmatpush1.msra.mxu0 0.0
    %119 = vmatprep.subr.mxu0 0.0
    %120 = vmatpush1.msra.mxu0 0.0
    %121 = vmatprep.subr.mxu0 0.0
    %122 = vmatpush1.msra.mxu0 0.0
    %123 = vmatprep.subr.mxu0 0.0
    %124 = vmatpush1.msra.mxu0 0.0
    %125 = vmatprep.subr.mxu0 0.0
    %126 = vmatpush1.msra.mxu0 0.0
    %127 = vmatprep.subr.mxu0 0.0
    %128 = vmatpush1.msra.mxu0 0.0
    %129 = vmatprep.subr.mxu0 0.0
    %130 = vmatpush1.msra.mxu0 0.0
    %131 = vmatprep.subr.mxu0 0.0
    %132 = vmatpush1.msra.mxu0 0.0
    %133 = vmatprep.subr.mxu0 0.0
    %134 = vmatpush1.msra.mxu0 0.0
    %135 = vmatprep.subr.mxu0 0.0
    %136 = vmatpush1.msra.mxu0 0.0
    %137 = vmatprep.subr.mxu0 0.0
    %138 = vmatpush1.msra.mxu0 0.0
    %139 = vmatprep.mubr.f32.mxu0 0.0
    %140 = vmatmul.mubr.f32.gmra.mrb[0].mxu0 %v69
    %v141 = vpop.f32.mrb[0].mxu0
    %v142 = vadd.f32 %v65, %v141
    %v143 = vpop.f32.mrb[0].mxu0
    %144 = vdwg.mxu0
    %v145 = vmax.f32 %v142, 0.0
    %v146 = vld [vmem:[#allocation7] sm:$0xff]
    %v147 = vld [vmem:[#allocation7 + $0x8] sm:$0xff]
    %v148 = vld [vmem:[#allocation7 + $0x10] sm:$0xff]
    %v149 = vld [vmem:[#allocation7 + $0x18] sm:$0xff]
    %v150 = vld [vmem:[%s4] sm:$0x1]
    %v152 = vlaneseq
    %v153 = vshrl.u32 %v152, 7
    %v154 = vsub.s32 0, %v153
    %v155 = vrot.slane %v150, %v154
    %vm157 = vcmask 261120
    %v159 = vsel %vm157, %v145, 0
    %161 = vmatprep.subr.mxu0 0.0
    %162 = vmatpush1.msra.mxu0 %v146
    %163 = vmatprep.subr.mxu0 0.0
    %164 = vmatpush1.msra.mxu0 %v147
    %165 = vmatprep.subr.mxu0 0.0
    %166 = vmatpush1.msra.mxu0 %v148
    %167 = vmatprep.subr.mxu0 0.0
    %168 = vmatpush1.msra.mxu0 %v149
    %169 = vmatprep.subr.mxu0 0.0
    %170 = vmatpush1.msra.mxu0 0.0
    %171 = vmatprep.subr.mxu0 0.0
    %172 = vmatpush1.msra.mxu0 0.0
    %173 = vmatprep.subr.mxu0 0.0
    %174 = vmatpush1.msra.mxu0 0.0
    %175 = vmatprep.subr.mxu0 0.0
    %176 = vmatpush1.msra.mxu0 0.0
    %177 = vmatprep.subr.mxu0 0.0
    %178 = vmatpush1.msra.mxu0 0.0
    %179 = vmatprep.subr.mxu0 0.0
    %180 = vmatpush1.msra.mxu0 0.0
    %181 = vmatprep.subr.mxu0 0.0
    %182 = vmatpush1.msra.mxu0 0.0
    %183 = vmatprep.subr.mxu0 0.0
    %184 = vmatpush1.msra.mxu0 0.0
    %185 = vmatprep.subr.mxu0 0.0
    %186 = vmatpush1.msra.mxu0 0.0
    %187 = vmatprep.subr.mxu0 0.0
    %188 = vmatpush1.msra.mxu0 0.0
    %189 = vmatprep.subr.mxu0 0.0
    %190 = vmatpush1.msra.mxu0 0.0
    %191 = vmatprep.subr.mxu0 0.0
    %192 = vmatpush1.msra.mxu0 0.0
    %193 = vmatprep.subr.mxu0 0.0
    %194 = vmatpush1.msra.mxu0 0.0
    %195 = vmatprep.subr.mxu0 0.0
    %196 = vmatpush1.msra.mxu0 0.0
    %197 = vmatprep.subr.mxu0 0.0
    %198 = vmatpush1.msra.mxu0 0.0
    %199 = vmatprep.subr.mxu0 0.0
    %200 = vmatpush1.msra.mxu0 0.0
    %201 = vmatprep.subr.mxu0 0.0
    %202 = vmatpush1.msra.mxu0 0.0
    %203 = vmatprep.subr.mxu0 0.0
    %204 = vmatpush1.msra.mxu0 0.0
    %205 = vmatprep.subr.mxu0 0.0
    %206 = vmatpush1.msra.mxu0 0.0
    %207 = vmatprep.subr.mxu0 0.0
    %208 = vmatpush1.msra.mxu0 0.0
    %209 = vmatprep.subr.mxu0 0.0
    %210 = vmatpush1.msra.mxu0 0.0
    %211 = vmatprep.subr.mxu0 0.0
    %212 = vmatpush1.msra.mxu0 0.0
    %213 = vmatprep.subr.mxu0 0.0
    %214 = vmatpush1.msra.mxu0 0.0
    %215 = vmatprep.subr.mxu0 0.0
    %216 = vmatpush1.msra.mxu0 0.0
    %217 = vmatprep.subr.mxu0 0.0
    %218 = vmatpush1.msra.mxu0 0.0
    %219 = vmatprep.subr.mxu0 0.0
    %220 = vmatpush1.msra.mxu0 0.0
    %221 = vmatprep.subr.mxu0 0.0
    %222 = vmatpush1.msra.mxu0 0.0
    %223 = vmatprep.subr.mxu0 0.0
    %224 = vmatpush1.msra.mxu0 0.0
    %225 = vmatprep.mubr.f32.mxu0 0.0
    %226 = vmatmul.mubr.f32.gmra.mrb[0].mxu0 %v159
    %v227 = vpop.f32.mrb[0].mxu0
    %v228 = vadd.f32 %v155, %v227
    %v229 = vpop.f32.mrb[0].mxu0
    %230 = vdwg.mxu0
    %231 = vst [vmem:[#allocation8] sm:$0x3] %v228
    // Predicated region
    $region34: #{net_forward.1} parent=1 // pred_check
      _
    $region35: #{net_forward.1} parent=1 // pred_check_branch
      %233 = sbr.rel (0) target = $region37
    $region36: #{net_forward.1} parent=1 // pred_region
      %s235 = ssub.s32 32, 32
      %236 = vsyncadd [#allocation4], %s235
      %s238 = sshll.u32 [#allocation8], 4
      %s239 = int_to_ptr.vmem [resolvable:$true] %s238
      %241 = dma.vmem_to_hbm [thread:$0]  %s239, 32, %s5, [#allocation4]
    $region37: #{net_forward.1} parent=1 // pred_fallthru
      _
    // Predicated region
    $region38: #{net_forward.1} parent=1 // pred_check
      _
    $region39: #{net_forward.1} parent=1 // pred_check_branch
      %243 = sbr.rel (0) target = $region41
    $region40: #{net_forward.1} parent=1 // pred_region
      %244 = dma.done [#allocation4], 32
    $region41: #{net_forward.1} parent=1 // pred_fallthru
      _
    %245 = vsyncpa [#allocation3], 1
    %246 = vsyncpa [#allocation6], 1
    %247 = vsyncpa [#allocation4], 1

</llo_original>
